<compile_context>
chip_gen: v6e
topology: v6e:2x2x1
jax: 0.10.0
libtpu: 0.0.40
codegen_flags: <defaults>
</compile_context>

<pallas_src>
import jax
import jax.numpy as jnp
import numpy as np
from jax.experimental import pallas as pl
from jax.experimental.pallas import tpu as pltpu


def _round_up(x, m):
    return ((x + m - 1) // m) * m


def _pick_tile(dim, max_tile, align=128):
    """Largest tile <= max_tile (multiple of `align`) that evenly divides the
    128-aligned padded extent, so padding never exceeds 128-alignment."""
    padded = _round_up(dim, align)
    tile = max_tile
    while padded % tile:
        tile -= align
    return tile, padded


def _complex_linear_kernel(xr_ref, xi_ref, wr_ref, wi_ref, bd_ref, bs_ref,
                           or_ref, oi_ref):
    k = pl.program_id(2)
    nk = pl.num_programs(2)
    tm = xr_ref.shape[0]

    @pl.when(k == 0)
    def _():
        or_ref[...] = jnp.zeros_like(or_ref)
        oi_ref[...] = jnp.zeros_like(oi_ref)

    # Stack the real/imag activation tiles along M so each weight tile is
    # pushed through the MXU once: 2 matmuls per step (M = 2*tm) instead of 4.
    x_cat = jnp.concatenate([xr_ref[...], xi_ref[...]], axis=0)        # (2tm, tk)

    yr = jnp.dot(x_cat, wr_ref[...], preferred_element_type=jnp.float32)  # [xr@Wr ; xi@Wr]
    yi = jnp.dot(x_cat, wi_ref[...], preferred_element_type=jnp.float32)  # [xr@Wi ; xi@Wi]

    rr = yr[:tm, :]   # x_r @ W_r^T
    ir = yr[tm:, :]   # x_i @ W_r^T
    ri = yi[:tm, :]   # x_r @ W_i^T
    ii = yi[tm:, :]   # x_i @ W_i^T

    or_ref[...] += rr - ii
    oi_ref[...] += ir + ri

    @pl.when(k == nk - 1)
    def _():
        # Bias epilogue in f32 (added exactly once, on the last K step).
        or_ref[...] += bd_ref[...]   # b_r - b_i
        oi_ref[...] += bs_ref[...]   # b_r + b_i


def prepare_complex_linear_params(w_r, w_i, b_r, b_i, *,
                                  compute_dtype=jnp.bfloat16,
                                  max_tn=256, max_tk=512):
    """One-time parameter prep: transpose + pad weights, fold the biases.

    w_r/w_i: (out, in).  b_r/b_i: (out,).  Call once at init, reuse per forward.
    """
    out_f, in_f = w_r.shape
    tn, out_pad = _pick_tile(out_f, max_tn)   # lane-dense outputs (mult. of 128)
    tk, in_pad = _pick_tile(in_f, max_tk)

    def pad_wt(w):
        wt = jnp.transpose(w).astype(compute_dtype)                      # (in, out)
        return jnp.pad(wt, ((0, in_pad - in_f), (0, out_pad - out_f)))

    b_r = b_r.astype(jnp.float32)
    b_i = b_i.astype(jnp.float32)

    def pad_b(b):
        return jnp.pad(b, (0, out_pad - out_f)).reshape(1, out_pad)

    return dict(
        wr_t=pad_wt(w_r), wi_t=pad_wt(w_i),
        b_diff=pad_b(b_r - b_i), b_sum=pad_b(b_r + b_i),
        in_features=in_f, out_features=out_f,
        tn=tn, tk=tk, compute_dtype=compute_dtype,
    )


def complex_linear_apply(x_r, x_i, params, *, max_tm=256):
    """x_r/x_i: (B, in_features) float arrays.  Returns complex64 (B, out)."""
    B, in_f = x_r.shape
    assert in_f == params["in_features"]
    out_f = params["out_features"]
    tn, tk = params["tn"], params["tk"]
    cdt = params["compute_dtype"]
    wr_t, wi_t = params["wr_t"], params["wi_t"]
    b_diff, b_sum = params["b_diff"], params["b_sum"]
    in_pad, out_pad = wr_t.shape

    # 16-row alignment covers bf16 sublane packing (and f32's 8).
    tm = min(max_tm, _round_up(B, 16))
    b_pad = _round_up(B, tm)

    def pad_x(x):
        return jnp.pad(x.astype(cdt), ((0, b_pad - B), (0, in_pad - in_f)))

    xr_p = pad_x(x_r)
    xi_p = pad_x(x_i)

    grid = (b_pad // tm, out_pad // tn, in_pad // tk)

    cdt_bytes = jnp.dtype(cdt).itemsize
    cost = pl.CostEstimate(
        flops=8 * b_pad * in_pad * out_pad,            # 4 real matmuls' worth
        transcendentals=0,
        bytes_accessed=(2 * b_pad * in_pad + 2 * in_pad * out_pad) * cdt_bytes
                       + 2 * out_pad * 4 + 2 * b_pad * out_pad * 4,
    )

    o_r, o_i = pl.pallas_call(
        _complex_linear_kernel,
        out_shape=(
            jax.ShapeDtypeStruct((b_pad, out_pad), jnp.float32),
            jax.ShapeDtypeStruct((b_pad, out_pad), jnp.float32),
        ),
        grid=grid,
        in_specs=[
            pl.BlockSpec((tm, tk), lambda i, j, k: (i, k)),   # x_r tile
            pl.BlockSpec((tm, tk), lambda i, j, k: (i, k)),   # x_i tile
            pl.BlockSpec((tk, tn), lambda i, j, k: (k, j)),   # W_r^T tile
            pl.BlockSpec((tk, tn), lambda i, j, k: (k, j)),   # W_i^T tile
            pl.BlockSpec((1, tn), lambda i, j, k: (0, j)),    # b_r - b_i
            pl.BlockSpec((1, tn), lambda i, j, k: (0, j)),    # b_r + b_i
        ],
        out_specs=(
            pl.BlockSpec((tm, tn), lambda i, j, k: (i, j)),
            pl.BlockSpec((tm, tn), lambda i, j, k: (i, j)),
        ),
        compiler_params=pltpu.CompilerParams(
            dimension_semantics=("parallel", "parallel", "arbitrary"),
            vmem_limit_bytes=32 * 1024 * 1024,
        ),
        cost_estimate=cost,
    )(xr_p, xi_p, wr_t, wi_t, b_diff, b_sum)

    return jax.lax.complex(o_r[:B, :out_f], o_i[:B, :out_f])


def init_complex_linear_params(key, in_features, out_features):
    """Deterministic re-implementation of complex_kaiming_normal_ (Rayleigh
    modulus, uniform phase) plus standard Linear bias init."""
    k_mod, k_phase, k_br, k_bi = jax.random.split(key, 4)
    fan_in = in_features
    s = 1.0 / fan_in
    u = jax.random.uniform(k_mod, (out_features, in_features),
                           minval=1e-7, maxval=1.0, dtype=jnp.float32)
    modulus = s * jnp.sqrt(-2.0 * jnp.log(u))      # Rayleigh(scale=s)
    phase = jax.random.uniform(k_phase, (out_features, in_features),
                               minval=-np.pi, maxval=np.pi, dtype=jnp.float32)
    w_r = modulus * jnp.cos(phase)
    w_i = modulus * jnp.sin(phase)
    bound = 1.0 / np.sqrt(fan_in)
    b_r = jax.random.uniform(k_br, (out_features,), minval=-bound, maxval=bound,
                             dtype=jnp.float32)
    b_i = jax.random.uniform(k_bi, (out_features,), minval=-bound, maxval=bound,
                             dtype=jnp.float32)
    return w_r, w_i, b_r, b_i


if __name__ == "__main__":
    key = jax.random.PRNGKey(0)
    k_params, k_xr, k_xi = jax.random.split(key, 3)

    B, IN_F, OUT_F = 8, 32, 32

    w_r, w_i, b_r, b_i = init_complex_linear_params(k_params, IN_F, OUT_F)
    x_r = jax.random.normal(k_xr, (B, IN_F), dtype=jnp.float32)
    x_i = jax.random.normal(k_xi, (B, IN_F), dtype=jnp.float32)

    # Pure-JAX reference of the apply_complex semantics.
    ref_real = x_r @ w_r.T + b_r - (x_i @ w_i.T + b_i)
    ref_imag = x_i @ w_r.T + b_r + (x_r @ w_i.T + b_i)

    # f32 path — tight check against the reference.
    params_f32 = prepare_complex_linear_params(w_r, w_i, b_r, b_i,
                                               compute_dtype=jnp.float32)
    out_f32 = jax.block_until_ready(complex_linear_apply(x_r, x_i, params_f32))
    np.testing.assert_allclose(np.asarray(out_f32.real), np.asarray(ref_real),
                               rtol=1e-5, atol=1e-5)
    np.testing.assert_allclose(np.asarray(out_f32.imag), np.asarray(ref_imag),
                               rtol=1e-5, atol=1e-5)

    # Default bf16-input / f32-accumulate fast path — loosened tolerance.
    params_bf16 = prepare_complex_linear_params(w_r, w_i, b_r, b_i)
    out_bf16 = jax.block_until_ready(complex_linear_apply(x_r, x_i, params_bf16))
    np.testing.assert_allclose(np.asarray(out_bf16.real), np.asarray(ref_real),
                               rtol=2e-2, atol=2e-2)
    np.testing.assert_allclose(np.asarray(out_bf16.imag), np.asarray(ref_imag),
                               rtol=2e-2, atol=2e-2)

    assert out_bf16.shape == (B, OUT_F) and out_bf16.dtype == jnp.complex64
    assert out_f32.shape == (B, OUT_F) and out_f32.dtype == jnp.complex64

    print("KERNEL_OK")
</pallas_src>

<mosaic_0001>
module attributes {stable_mosaic.version = 11 : i64} {
  func.func @_complex_linear_kernel(%arg0: i32, %arg1: i32, %arg2: i32, %arg3: memref<16x128xf32, #tpu.memory_space<vmem>>, %arg4: memref<16x128xf32, #tpu.memory_space<vmem>>, %arg5: memref<128x128xf32, #tpu.memory_space<vmem>>, %arg6: memref<128x128xf32, #tpu.memory_space<vmem>>, %arg7: memref<1x128xf32, #tpu.memory_space<vmem>>, %arg8: memref<1x128xf32, #tpu.memory_space<vmem>>, %arg9: memref<16x128xf32, #tpu.memory_space<vmem>>, %arg10: memref<16x128xf32, #tpu.memory_space<vmem>>) attributes {dimension_semantics = [#tpu.dimension_semantics<parallel>, #tpu.dimension_semantics<parallel>, #tpu.dimension_semantics<arbitrary>], iteration_bounds = array<i64: 1, 1, 1>, scalar_prefetch = 0 : i64, scratch_operands = 0 : i64, tpu.core_type = #tpu.core_type<tc>, window_params = [{transform_indices = @transform_0, window_bounds = array<i64: 16, 128>}, {transform_indices = @transform_1, window_bounds = array<i64: 16, 128>}, {transform_indices = @transform_2, window_bounds = array<i64: 128, 128>}, {transform_indices = @transform_3, window_bounds = array<i64: 128, 128>}, {transform_indices = @transform_4, window_bounds = array<i64: 1, 128>}, {transform_indices = @transform_5, window_bounds = array<i64: 1, 128>}, {transform_indices = @transform_6, window_bounds = array<i64: 16, 128>}, {transform_indices = @transform_7, window_bounds = array<i64: 16, 128>}]} {
    %c0_i32 = arith.constant 0 : i32
    %0 = arith.cmpi eq, %arg2, %c0_i32 : i32
    %1 = arith.extui %0 : i1 to i32
    %c0_i32_0 = arith.constant 0 : i32
    %2 = arith.cmpi ne, %1, %c0_i32_0 : i32
    scf.if %2 {
      %cst_19 = arith.constant 0.000000e+00 : f32
      %25 = vector.broadcast %cst_19 : f32 to vector<16x128xf32>
      %c0_20 = arith.constant 0 : index
      %c0_21 = arith.constant 0 : index
      %26 = vector.load %arg9[%c0_20, %c0_21] : memref<16x128xf32, #tpu.memory_space<vmem>>, vector<16x128xf32>
      tpu.vector_store %arg9[%c0_20, %c0_21], %25 {strides = array<i32>} : memref<16x128xf32, #tpu.memory_space<vmem>>, vector<16x128xf32>,
      %cst_22 = arith.constant 0.000000e+00 : f32
      %27 = vector.broadcast %cst_22 : f32 to vector<16x128xf32>
      %c0_23 = arith.constant 0 : index
      %c0_24 = arith.constant 0 : index
      %28 = vector.load %arg10[%c0_23, %c0_24] : memref<16x128xf32, #tpu.memory_space<vmem>>, vector<16x128xf32>
      tpu.vector_store %arg10[%c0_23, %c0_24], %27 {strides = array<i32>} : memref<16x128xf32, #tpu.memory_space<vmem>>, vector<16x128xf32>,
    } else {
    }
    %c0 = arith.constant 0 : index
    %c0_1 = arith.constant 0 : index
    %3 = vector.load %arg3[%c0, %c0_1] : memref<16x128xf32, #tpu.memory_space<vmem>>, vector<16x128xf32>
    %c0_2 = arith.constant 0 : index
    %c0_3 = arith.constant 0 : index
    %4 = vector.load %arg4[%c0_2, %c0_3] : memref<16x128xf32, #tpu.memory_space<vmem>>, vector<16x128xf32>
    %5 = tpu.concatenate %3, %4 in 0 : vector<16x128xf32>, vector<16x128xf32> -> vector<32x128xf32>
    %c0_4 = arith.constant 0 : index
    %c0_5 = arith.constant 0 : index
    %6 = vector.load %arg5[%c0_4, %c0_5] : memref<128x128xf32, #tpu.memory_space<vmem>>, vector<128x128xf32>
    %cst = arith.constant dense<0.000000e+00> : vector<32x128xf32>
    %7 = tpu.matmul %5, %6, %cst {dimension_numbers = #tpu.dot_dimension_numbers<[1], [0], [0], [1], [0, 0, 1, 1], [], []>} : vector<32x128xf32>, vector<128x128xf32>, vector<32x128xf32> -> vector<32x128xf32>
    %c0_6 = arith.constant 0 : index
    %c0_7 = arith.constant 0 : index
    %8 = vector.load %arg6[%c0_6, %c0_7] : memref<128x128xf32, #tpu.memory_space<vmem>>, vector<128x128xf32>
    %cst_8 = arith.constant dense<0.000000e+00> : vector<32x128xf32>
    %9 = tpu.matmul %5, %8, %cst_8 {dimension_numbers = #tpu.dot_dimension_numbers<[1], [0], [0], [1], [0, 0, 1, 1], [], []>} : vector<32x128xf32>, vector<128x128xf32>, vector<32x128xf32> -> vector<32x128xf32>
    %10 = vector.extract_strided_slice %7 {offsets = [0, 0], sizes = [16, 128], strides = [1, 1]} : vector<32x128xf32> to vector<16x128xf32>
    %11 = vector.extract_strided_slice %7 {offsets = [16, 0], sizes = [16, 128], strides = [1, 1]} : vector<32x128xf32> to vector<16x128xf32>
    %12 = vector.extract_strided_slice %9 {offsets = [0, 0], sizes = [16, 128], strides = [1, 1]} : vector<32x128xf32> to vector<16x128xf32>
    %13 = vector.extract_strided_slice %9 {offsets = [16, 0], sizes = [16, 128], strides = [1, 1]} : vector<32x128xf32> to vector<16x128xf32>
    %c0_9 = arith.constant 0 : index
    %c0_10 = arith.constant 0 : index
    %14 = vector.load %arg9[%c0_9, %c0_10] : memref<16x128xf32, #tpu.memory_space<vmem>>, vector<16x128xf32>
    %15 = arith.subf %10, %13 : vector<16x128xf32>
    %16 = arith.addf %14, %15 : vector<16x128xf32>
    %c0_11 = arith.constant 0 : index
    %c0_12 = arith.constant 0 : index
    %17 = vector.load %arg9[%c0_11, %c0_12] : memref<16x128xf32, #tpu.memory_space<vmem>>, vector<16x128xf32>
    tpu.vector_store %arg9[%c0_11, %c0_12], %16 {strides = array<i32>} : memref<16x128xf32, #tpu.memory_space<vmem>>, vector<16x128xf32>,
    %c0_13 = arith.constant 0 : index
    %c0_14 = arith.constant 0 : index
    %18 = vector.load %arg10[%c0_13, %c0_14] : memref<16x128xf32, #tpu.memory_space<vmem>>, vector<16x128xf32>
    %19 = arith.addf %11, %12 : vector<16x128xf32>
    %20 = arith.addf %18, %19 : vector<16x128xf32>
    %c0_15 = arith.constant 0 : index
    %c0_16 = arith.constant 0 : index
    %21 = vector.load %arg10[%c0_15, %c0_16] : memref<16x128xf32, #tpu.memory_space<vmem>>, vector<16x128xf32>
    tpu.vector_store %arg10[%c0_15, %c0_16], %20 {strides = array<i32>} : memref<16x128xf32, #tpu.memory_space<vmem>>, vector<16x128xf32>,
    %c0_i32_17 = arith.constant 0 : i32
    %22 = arith.cmpi eq, %arg2, %c0_i32_17 : i32
    %23 = arith.extui %22 : i1 to i32
    %c0_i32_18 = arith.constant 0 : i32
    %24 = arith.cmpi ne, %23, %c0_i32_18 : i32
    scf.if %24 {
      %c0_19 = arith.constant 0 : index
      %c0_20 = arith.constant 0 : index
      %25 = vector.load %arg9[%c0_19, %c0_20] : memref<16x128xf32, #tpu.memory_space<vmem>>, vector<16x128xf32>
      %c0_21 = arith.constant 0 : index
      %c0_22 = arith.constant 0 : index
      %26 = vector.load %arg7[%c0_21, %c0_22] : memref<1x128xf32, #tpu.memory_space<vmem>>, vector<1x128xf32>
      %27 = vector.broadcast %26 : vector<1x128xf32> to vector<16x128xf32>
      %28 = arith.addf %25, %27 : vector<16x128xf32>
      %c0_23 = arith.constant 0 : index
      %c0_24 = arith.constant 0 : index
      %29 = vector.load %arg9[%c0_23, %c0_24] : memref<16x128xf32, #tpu.memory_space<vmem>>, vector<16x128xf32>
      tpu.vector_store %arg9[%c0_23, %c0_24], %28 {strides = array<i32>} : memref<16x128xf32, #tpu.memory_space<vmem>>, vector<16x128xf32>,
      %c0_25 = arith.constant 0 : index
      %c0_26 = arith.constant 0 : index
      %30 = vector.load %arg10[%c0_25, %c0_26] : memref<16x128xf32, #tpu.memory_space<vmem>>, vector<16x128xf32>
      %c0_27 = arith.constant 0 : index
      %c0_28 = arith.constant 0 : index
      %31 = vector.load %arg8[%c0_27, %c0_28] : memref<1x128xf32, #tpu.memory_space<vmem>>, vector<1x128xf32>
      %32 = vector.broadcast %31 : vector<1x128xf32> to vector<16x128xf32>
      %33 = arith.addf %30, %32 : vector<16x128xf32>
      %c0_29 = arith.constant 0 : index
      %c0_30 = arith.constant 0 : index
      %34 = vector.load %arg10[%c0_29, %c0_30] : memref<16x128xf32, #tpu.memory_space<vmem>>, vector<16x128xf32>
      tpu.vector_store %arg10[%c0_29, %c0_30], %33 {strides = array<i32>} : memref<16x128xf32, #tpu.memory_space<vmem>>, vector<16x128xf32>,
    } else {
    }
    return
  }
  func.func @transform_0(%arg0: i32, %arg1: i32, %arg2: i32) -> (i32, i32) {
    %c0_i32 = arith.constant 0 : i32
    return %arg0, %arg2 : i32, i32
  }
  func.func @transform_1(%arg0: i32, %arg1: i32, %arg2: i32) -> (i32, i32) {
    %c0_i32 = arith.constant 0 : i32
    return %arg0, %arg2 : i32, i32
  }
  func.func @transform_2(%arg0: i32, %arg1: i32, %arg2: i32) -> (i32, i32) {
    %c0_i32 = arith.constant 0 : i32
    return %arg2, %arg1 : i32, i32
  }
  func.func @transform_3(%arg0: i32, %arg1: i32, %arg2: i32) -> (i32, i32) {
    %c0_i32 = arith.constant 0 : i32
    return %arg2, %arg1 : i32, i32
  }
  func.func @transform_4(%arg0: i32, %arg1: i32, %arg2: i32) -> (i32, i32) {
    %c0_i32 = arith.constant 0 : i32
    %c0_i32_0 = arith.constant 0 : i32
    return %c0_i32, %arg1 : i32, i32
  }
  func.func @transform_5(%arg0: i32, %arg1: i32, %arg2: i32) -> (i32, i32) {
    %c0_i32 = arith.constant 0 : i32
    %c0_i32_0 = arith.constant 0 : i32
    return %c0_i32, %arg1 : i32, i32
  }
  func.func @transform_6(%arg0: i32, %arg1: i32, %arg2: i32) -> (i32, i32) {
    %c0_i32 = arith.constant 0 : i32
    return %arg0, %arg1 : i32, i32
  }
  func.func @transform_7(%arg0: i32, %arg1: i32, %arg2: i32) -> (i32, i32) {
    %c0_i32 = arith.constant 0 : i32
    return %arg0, %arg1 : i32, i32
  }
}

</mosaic_0001>

<llo_original>
// kernel: tpu_custom_call.1
$region0: #{tpu_custom_call.1}
  #allocation0 [shape = 'u32[]', space=smem, size = 0x4, offset = 0x4, fixed_abs, tag = 'smem constant byte address 0x4 - core index']
  #allocation1 [shape = 'u32[144,128]{1,0:T(1,128)}', space=vmem, size = 0x12000, scoped, tag = 'internal scratch']
  %s0 = inlined_call_operand.hbm [shape: f32[16,128], index: 0, kind: input, shape index: {}]
  %s1 = inlined_call_operand.hbm [shape: f32[16,128], index: 1, kind: input, shape index: {}]
  %s2 = inlined_call_operand.hbm [shape: f32[128,128], index: 2, kind: input, shape index: {}]
  %s3 = inlined_call_operand.hbm [shape: f32[128,128], index: 3, kind: input, shape index: {}]
  %s4 = inlined_call_operand.vmem [shape: f32[1,128], index: 4, kind: input, shape index: {}]
  %s5 = inlined_call_operand.vmem [shape: f32[1,128], index: 5, kind: input, shape index: {}]
  %s6 = inlined_call_operand.hbm [shape: f32[16,128], index: 6, kind: output, shape index: {0}]
  %s7 = inlined_call_operand.hbm [shape: f32[16,128], index: 7, kind: output, shape index: {1}]
  %8 = xla_tuple %s6, %s7
  %s9 = sld [smem:[#allocation0]]
  $region66: #{tpu_custom_call.1} parent=0
    _
  %s11 = ssub.s32 1, %s9
  %s12 = scalar_select 0, %s11, %s9
  $region1: #{tpu_custom_call.1} parent=0
    #allocation2 [shape = 'u8[8192]{0}', space=vmem, size = 0x2000, scoped, tag = 'input window, operand 0, single buffered']
    #allocation3 [shape = 's32[1]{0}', space=sflag, size = 0x4, scoped, tag = 'scoped memory for tpu_custom_call.1']
    #allocation4 [shape = 's32[1]{0}', space=sflag, size = 0x4, scoped, tag = 'scoped memory for tpu_custom_call.1']
    #allocation5 [shape = 'u8[8192]{0}', space=vmem, size = 0x2000, scoped, tag = 'input window, operand 1, single buffered']
    #allocation6 [shape = 's32[1]{0}', space=sflag, size = 0x4, scoped, tag = 'scoped memory for tpu_custom_call.1']
    #allocation7 [shape = 'u8[65536]{0}', space=vmem, size = 0x10000, scoped, tag = 'input window, operand 2, single buffered']
    #allocation8 [shape = 'u8[65536]{0}', space=vmem, size = 0x10000, scoped, tag = 'input window, operand 3, single buffered']
    #allocation9 [shape = 's32[1]{0}', space=sflag, size = 0x4, scoped, tag = 'scoped memory for tpu_custom_call.1']
    #allocation10 [shape = 'u8[8192]{0}', space=vmem, size = 0x2000, scoped, tag = 'output window, operand 0, single buffered']
    #allocation11 [shape = 'u8[8192]{0}', space=vmem, size = 0x2000, scoped, tag = 'output window, operand 1, single buffered']
    #allocation12 [shape = 's32[1]{0}', space=sflag, size = 0x4, scoped, tag = 'scoped memory for tpu_custom_call.1']
    %13 = vsyncpa [#allocation3], 0
    %14 = vsyncpa [#allocation6], 0
    %15 = vsyncpa [#allocation9], 0
    %16 = vsyncpa [#allocation4], 0
    %17 = vsyncpa [#allocation12], 0
    // Predicated region
    $region2: #{tpu_custom_call.1} parent=1 // pred_check
      _
    $region3: #{tpu_custom_call.1} parent=1 // pred_check_branch
      %19 = sbr.rel (0) target = $region5
    $region4: #{tpu_custom_call.1} parent=1 // pred_region
      %s21 = ssub.s32 256, 256
      %22 = vsyncadd [#allocation3], %s21
      %s23 = sshll.u32 [#allocation2], 4
      %s24 = int_to_ptr.vmem [resolvable:$true] %s23
      %29 = dma.hbm_to_vmem [thread:$0]  %s0, 256, %s24, [#allocation3], 128, 128, 8
    $region5: #{tpu_custom_call.1} parent=1 // pred_fallthru
      _
    // Predicated region
    $region6: #{tpu_custom_call.1} parent=1 // pred_check
      _
    $region7: #{tpu_custom_call.1} parent=1 // pred_check_branch
      %31 = sbr.rel (0) target = $region9
    $region8: #{tpu_custom_call.1} parent=1 // pred_region
      %s33 = ssub.s32 256, 256
      %34 = vsyncadd [#allocation6], %s33
      %s35 = sshll.u32 [#allocation5], 4
      %s36 = int_to_ptr.vmem [resolvable:$true] %s35
      %41 = dma.hbm_to_vmem [thread:$0]  %s1, 256, %s36, [#allocation6], 128, 128, 8
    $region9: #{tpu_custom_call.1} parent=1 // pred_fallthru
      _
    // Predicated region
    $region10: #{tpu_custom_call.1} parent=1 // pred_check
      _
    $region11: #{tpu_custom_call.1} parent=1 // pred_check_branch
      %43 = sbr.rel (0) target = $region13
    $region12: #{tpu_custom_call.1} parent=1 // pred_region
      %s45 = ssub.s32 2048, 2048
      %46 = vsyncadd [#allocation6], %s45
      %s47 = sshll.u32 [#allocation7], 4
      %s48 = int_to_ptr.vmem [resolvable:$true] %s47
      %53 = dma.hbm_to_vmem [thread:$0]  %s2, 2048, %s48, [#allocation6], 128, 128, 8
    $region13: #{tpu_custom_call.1} parent=1 // pred_fallthru
      _
    // Predicated region
    $region14: #{tpu_custom_call.1} parent=1 // pred_check
      _
    $region15: #{tpu_custom_call.1} parent=1 // pred_check_branch
      %55 = sbr.rel (0) target = $region17
    $region16: #{tpu_custom_call.1} parent=1 // pred_region
      %s57 = ssub.s32 2048, 2048
      %58 = vsyncadd [#allocation9], %s57
      %s59 = sshll.u32 [#allocation8], 4
      %s60 = int_to_ptr.vmem [resolvable:$true] %s59
      %65 = dma.hbm_to_vmem [thread:$0]  %s3, 2048, %s60, [#allocation9], 128, 128, 8
    $region17: #{tpu_custom_call.1} parent=1 // pred_fallthru
      _
    // Predicated region
    $region18: #{tpu_custom_call.1} parent=1 // pred_check
      _
    $region19: #{tpu_custom_call.1} parent=1 // pred_check_branch
      %67 = sbr.rel (0) target = $region21
    $region20: #{tpu_custom_call.1} parent=1 // pred_region
      _
    $region21: #{tpu_custom_call.1} parent=1 // pred_fallthru
      _
    // Predicated region
    $region22: #{tpu_custom_call.1} parent=1 // pred_check
      _
    $region23: #{tpu_custom_call.1} parent=1 // pred_check_branch
      %69 = sbr.rel (0) target = $region25
    $region24: #{tpu_custom_call.1} parent=1 // pred_region
      _
    $region25: #{tpu_custom_call.1} parent=1 // pred_fallthru
      _
    // Predicated region
    $region26: #{tpu_custom_call.1} parent=1 // pred_check
      _
    $region27: #{tpu_custom_call.1} parent=1 // pred_check_branch
      %71 = sbr.rel (0) target = $region29
    $region28: #{tpu_custom_call.1} parent=1 // pred_region
      %72 = dma.done [#allocation3], 256
    $region29: #{tpu_custom_call.1} parent=1 // pred_fallthru
      _
    // Predicated region
    $region30: #{tpu_custom_call.1} parent=1 // pred_check
      _
    $region31: #{tpu_custom_call.1} parent=1 // pred_check_branch
      %74 = sbr.rel (0) target = $region33
    $region32: #{tpu_custom_call.1} parent=1 // pred_region
      %75 = dma.done [#allocation6], 256
    $region33: #{tpu_custom_call.1} parent=1 // pred_fallthru
      _
    // Predicated region
    $region34: #{tpu_custom_call.1} parent=1 // pred_check
      _
    $region35: #{tpu_custom_call.1} parent=1 // pred_check_branch
      %77 = sbr.rel (0) target = $region37
    $region36: #{tpu_custom_call.1} parent=1 // pred_region
      %78 = dma.done [#allocation6], 2048
    $region37: #{tpu_custom_call.1} parent=1 // pred_fallthru
      _
    // Predicated region
    $region38: #{tpu_custom_call.1} parent=1 // pred_check
      _
    $region39: #{tpu_custom_call.1} parent=1 // pred_check_branch
      %80 = sbr.rel (0) target = $region41
    $region40: #{tpu_custom_call.1} parent=1 // pred_region
      %81 = dma.done [#allocation9], 2048
    $region41: #{tpu_custom_call.1} parent=1 // pred_fallthru
      _
    %p82 = scmp.eq.s32.totalorder 0, 0
    // Predicated region
    $region42: #{tpu_custom_call.1} parent=1 // pred_check
      %p83 = pneg %p82
    $region43: #{tpu_custom_call.1} parent=1 // pred_check_branch
      %85 = sbr.rel (%p83) target = $region45
    $region44: #{tpu_custom_call.1} parent=1 // pred_region
      %86 = vst [vmem:[#allocation10] sm:$0xff] 0.0
      %87 = vst [vmem:[#allocation10 + $0x8] sm:$0xff] 0.0
      %88 = vst [vmem:[#allocation11] sm:$0xff] 0.0
      %89 = vst [vmem:[#allocation11 + $0x8] sm:$0xff] 0.0
    $region45: #{tpu_custom_call.1} parent=1 // pred_fallthru
      _
    %v90 = vld [vmem:[#allocation2] sm:$0xff]
    %v91 = vld [vmem:[#allocation2 + $0x8] sm:$0xff]
    %v92 = vld [vmem:[#allocation5] sm:$0xff]
    %v93 = vld [vmem:[#allocation5 + $0x8] sm:$0xff]
    %v94 = vld [vmem:[#allocation7] sm:$0xff]
    %v95 = vld [vmem:[#allocation7 + $0x8] sm:$0xff]
    %v96 = vld [vmem:[#allocation7 + $0x10] sm:$0xff]
    %v97 = vld [vmem:[#allocation7 + $0x18] sm:$0xff]
    %v98 = vld [vmem:[#allocation7 + $0x20] sm:$0xff]
    %v99 = vld [vmem:[#allocation7 + $0x28] sm:$0xff]
    %v100 = vld [vmem:[#allocation7 + $0x30] sm:$0xff]
    %v101 = vld [vmem:[#allocation7 + $0x38] sm:$0xff]
    %v102 = vld [vmem:[#allocation7 + $0x40] sm:$0xff]
    %v103 = vld [vmem:[#allocation7 + $0x48] sm:$0xff]
    %v104 = vld [vmem:[#allocation7 + $0x50] sm:$0xff]
    %v105 = vld [vmem:[#allocation7 + $0x58] sm:$0xff]
    %v106 = vld [vmem:[#allocation7 + $0x60] sm:$0xff]
    %v107 = vld [vmem:[#allocation7 + $0x68] sm:$0xff]
    %v108 = vld [vmem:[#allocation7 + $0x70] sm:$0xff]
    %v109 = vld [vmem:[#allocation7 + $0x78] sm:$0xff]
    %110 = vmatprep.subr.mxu0 0.0
    %111 = vmatpush1.msra.mxu0 %v109
    %112 = vmatprep.subr.mxu0 0.0
    %113 = vmatpush1.msra.mxu0 %v108
    %114 = vmatprep.subr.mxu0 0.0
    %115 = vmatpush1.msra.mxu0 %v107
    %116 = vmatprep.subr.mxu0 0.0
    %117 = vmatpush1.msra.mxu0 %v106
    %118 = vmatprep.subr.mxu0 0.0
    %119 = vmatpush1.msra.mxu0 %v105
    %120 = vmatprep.subr.mxu0 0.0
    %121 = vmatpush1.msra.mxu0 %v104
    %122 = vmatprep.subr.mxu0 0.0
    %123 = vmatpush1.msra.mxu0 %v103
    %124 = vmatprep.subr.mxu0 0.0
    %125 = vmatpush1.msra.mxu0 %v102
    %126 = vmatprep.subr.mxu0 0.0
    %127 = vmatpush1.msra.mxu0 %v101
    %128 = vmatprep.subr.mxu0 0.0
    %129 = vmatpush1.msra.mxu0 %v100
    %130 = vmatprep.subr.mxu0 0.0
    %131 = vmatpush1.msra.mxu0 %v99
    %132 = vmatprep.subr.mxu0 0.0
    %133 = vmatpush1.msra.mxu0 %v98
    %134 = vmatprep.subr.mxu0 0.0
    %135 = vmatpush1.msra.mxu0 %v97
    %136 = vmatprep.subr.mxu0 0.0
    %137 = vmatpush1.msra.mxu0 %v96
    %138 = vmatprep.subr.mxu0 0.0
    %139 = vmatpush1.msra.mxu0 %v95
    %140 = vmatprep.subr.mxu0 0.0
    %141 = vmatpush1.msra.mxu0 %v94
    %142 = vmatprep.subr.mxu0 0.0
    %143 = vmatpush2.msra.mxu0 0.0
    %144 = vmatprep.subr.mxu0 0.0
    %145 = vmatpush2.msra.mxu0 0.0
    %146 = vmatprep.subr.mxu0 0.0
    %147 = vmatpush2.msra.mxu0 0.0
    %148 = vmatprep.subr.mxu0 0.0
    %149 = vmatpush2.msra.mxu0 0.0
    %150 = vmatprep.subr.mxu0 0.0
    %151 = vmatpush2.msra.mxu0 0.0
    %152 = vmatprep.subr.mxu0 0.0
    %153 = vmatpush2.msra.mxu0 0.0
    %154 = vmatprep.subr.mxu0 0.0
    %155 = vmatpush2.msra.mxu0 0.0
    %156 = vmatprep.subr.mxu0 0.0
    %157 = vmatpush2.msra.mxu0 0.0
    %158 = vmatprep.subr.mxu0 0.0
    %159 = vmatpush2.msra.mxu0 0.0
    %160 = vmatprep.subr.mxu0 0.0
    %161 = vmatpush2.msra.mxu0 0.0
    %162 = vmatprep.subr.mxu0 0.0
    %163 = vmatpush2.msra.mxu0 0.0
    %164 = vmatprep.subr.mxu0 0.0
    %165 = vmatpush2.msra.mxu0 0.0
    %166 = vmatprep.subr.mxu0 0.0
    %167 = vmatpush2.msra.mxu0 0.0
    %168 = vmatprep.subr.mxu0 0.0
    %169 = vmatpush2.msra.mxu0 0.0
    %170 = vmatprep.subr.mxu0 0.0
    %171 = vmatpush2.msra.mxu0 0.0
    %172 = vmatprep.subr.mxu0 0.0
    %173 = vmatpush2.msra.mxu0 0.0
    %174 = vmatprep.mubr.f32.mxu0 0.0
    %175 = vmatmul.mubr.f32.gmra.mxu0 %v90
    %v176 = vpop.f32.mrf.mxu0
    %v177 = vadd.f32 0.0, %v176
    %v178 = vpop.f32.mrf.mxu0
    %179 = vmatprep.mubr.f32.mxu0 0.0
    %180 = vmatmul.mubr.f32.gmra.mxu0 %v91
    %v181 = vpop.f32.mrf.mxu0
    %v182 = vadd.f32 0.0, %v181
    %v183 = vpop.f32.mrf.mxu0
    %184 = vmatprep.mubr.f32.mxu0 0.0
    %185 = vmatmul.mubr.f32.gmra.mxu0 %v92
    %v186 = vpop.f32.mrf.mxu0
    %v187 = vadd.f32 0.0, %v186
    %v188 = vpop.f32.mrf.mxu0
    %189 = vmatprep.mubr.f32.mxu0 0.0
    %190 = vmatmul.mubr.f32.gmra.mxu0 %v93
    %v191 = vpop.f32.mrf.mxu0
    %v192 = vadd.f32 0.0, %v191
    %v193 = vpop.f32.mrf.mxu0
    %194 = vdwg.mxu0
    %v195 = vld [vmem:[#allocation8] sm:$0xff]
    %v196 = vld [vmem:[#allocation8 + $0x8] sm:$0xff]
    %v197 = vld [vmem:[#allocation8 + $0x10] sm:$0xff]
    %v198 = vld [vmem:[#allocation8 + $0x18] sm:$0xff]
    %v199 = vld [vmem:[#allocation8 + $0x20] sm:$0xff]
    %v200 = vld [vmem:[#allocation8 + $0x28] sm:$0xff]
    %v201 = vld [vmem:[#allocation8 + $0x30] sm:$0xff]
    %v202 = vld [vmem:[#allocation8 + $0x38] sm:$0xff]
    %v203 = vld [vmem:[#allocation8 + $0x40] sm:$0xff]
    %v204 = vld [vmem:[#allocation8 + $0x48] sm:$0xff]
    %v205 = vld [vmem:[#allocation8 + $0x50] sm:$0xff]
    %v206 = vld [vmem:[#allocation8 + $0x58] sm:$0xff]
    %v207 = vld [vmem:[#allocation8 + $0x60] sm:$0xff]
    %v208 = vld [vmem:[#allocation8 + $0x68] sm:$0xff]
    %v209 = vld [vmem:[#allocation8 + $0x70] sm:$0xff]
    %v210 = vld [vmem:[#allocation8 + $0x78] sm:$0xff]
    %211 = vmatprep.subr.mxu0 0.0
    %212 = vmatpush1.msra.mxu0 %v210
    %213 = vmatprep.subr.mxu0 0.0
    %214 = vmatpush1.msra.mxu0 %v209
    %215 = vmatprep.subr.mxu0 0.0
    %216 = vmatpush1.msra.mxu0 %v208
    %217 = vmatprep.subr.mxu0 0.0
    %218 = vmatpush1.msra.mxu0 %v207
    %219 = vmatprep.subr.mxu0 0.0
    %220 = vmatpush1.msra.mxu0 %v206
    %221 = vmatprep.subr.mxu0 0.0
    %222 = vmatpush1.msra.mxu0 %v205
    %223 = vmatprep.subr.mxu0 0.0
    %224 = vmatpush1.msra.mxu0 %v204
    %225 = vmatprep.subr.mxu0 0.0
    %226 = vmatpush1.msra.mxu0 %v203
    %227 = vmatprep.subr.mxu0 0.0
    %228 = vmatpush1.msra.mxu0 %v202
    %229 = vmatprep.subr.mxu0 0.0
    %230 = vmatpush1.msra.mxu0 %v201
    %231 = vmatprep.subr.mxu0 0.0
    %232 = vmatpush1.msra.mxu0 %v200
    %233 = vmatprep.subr.mxu0 0.0
    %234 = vmatpush1.msra.mxu0 %v199
    %235 = vmatprep.subr.mxu0 0.0
    %236 = vmatpush1.msra.mxu0 %v198
    %237 = vmatprep.subr.mxu0 0.0
    %238 = vmatpush1.msra.mxu0 %v197
    %239 = vmatprep.subr.mxu0 0.0
    %240 = vmatpush1.msra.mxu0 %v196
    %241 = vmatprep.subr.mxu0 0.0
    %242 = vmatpush1.msra.mxu0 %v195
    %243 = vmatprep.subr.mxu0 0.0
    %244 = vmatpush2.msra.mxu0 0.0
    %245 = vmatprep.subr.mxu0 0.0
    %246 = vmatpush2.msra.mxu0 0.0
    %247 = vmatprep.subr.mxu0 0.0
    %248 = vmatpush2.msra.mxu0 0.0
    %249 = vmatprep.subr.mxu0 0.0
    %250 = vmatpush2.msra.mxu0 0.0
    %251 = vmatprep.subr.mxu0 0.0
    %252 = vmatpush2.msra.mxu0 0.0
    %253 = vmatprep.subr.mxu0 0.0
    %254 = vmatpush2.msra.mxu0 0.0
    %255 = vmatprep.subr.mxu0 0.0
    %256 = vmatpush2.msra.mxu0 0.0
    %257 = vmatprep.subr.mxu0 0.0
    %258 = vmatpush2.msra.mxu0 0.0
    %259 = vmatprep.subr.mxu0 0.0
    %260 = vmatpush2.msra.mxu0 0.0
    %261 = vmatprep.subr.mxu0 0.0
    %262 = vmatpush2.msra.mxu0 0.0
    %263 = vmatprep.subr.mxu0 0.0
    %264 = vmatpush2.msra.mxu0 0.0
    %265 = vmatprep.subr.mxu0 0.0
    %266 = vmatpush2.msra.mxu0 0.0
    %267 = vmatprep.subr.mxu0 0.0
    %268 = vmatpush2.msra.mxu0 0.0
    %269 = vmatprep.subr.mxu0 0.0
    %270 = vmatpush2.msra.mxu0 0.0
    %271 = vmatprep.subr.mxu0 0.0
    %272 = vmatpush2.msra.mxu0 0.0
    %273 = vmatprep.subr.mxu0 0.0
    %274 = vmatpush2.msra.mxu0 0.0
    %275 = vmatprep.mubr.f32.mxu0 0.0
    %276 = vmatmul.mubr.f32.gmra.mxu0 %v90
    %v277 = vpop.f32.mrf.mxu0
    %v278 = vadd.f32 0.0, %v277
    %v279 = vpop.f32.mrf.mxu0
    %280 = vmatprep.mubr.f32.mxu0 0.0
    %281 = vmatmul.mubr.f32.gmra.mxu0 %v91
    %v282 = vpop.f32.mrf.mxu0
    %v283 = vadd.f32 0.0, %v282
    %v284 = vpop.f32.mrf.mxu0
    %285 = vmatprep.mubr.f32.mxu0 0.0
    %286 = vmatmul.mubr.f32.gmra.mxu0 %v92
    %v287 = vpop.f32.mrf.mxu0
    %v288 = vadd.f32 0.0, %v287
    %v289 = vpop.f32.mrf.mxu0
    %290 = vmatprep.mubr.f32.mxu0 0.0
    %291 = vmatmul.mubr.f32.gmra.mxu0 %v93
    %v292 = vpop.f32.mrf.mxu0
    %v293 = vadd.f32 0.0, %v292
    %v294 = vpop.f32.mrf.mxu0
    %295 = vdwg.mxu0
    %v296 = vld [vmem:[#allocation10] sm:$0xff]
    %v297 = vld [vmem:[#allocation10 + $0x8] sm:$0xff]
    %v298 = vsub.f32 %v177, %v288
    %v299 = vsub.f32 %v182, %v293
    %v300 = vadd.f32 %v296, %v298
    %v301 = vadd.f32 %v297, %v299
    %302 = vst [vmem:[#allocation10] sm:$0xff] %v300
    %303 = vst [vmem:[#allocation10 + $0x8] sm:$0xff] %v301
    %v304 = vld [vmem:[#allocation11] sm:$0xff]
    %v305 = vld [vmem:[#allocation11 + $0x8] sm:$0xff]
    %v306 = vadd.f32 %v187, %v278
    %v307 = vadd.f32 %v192, %v283
    %v308 = vadd.f32 %v304, %v306
    %v309 = vadd.f32 %v305, %v307
    %310 = vst [vmem:[#allocation11] sm:$0xff] %v308
    %311 = vst [vmem:[#allocation11 + $0x8] sm:$0xff] %v309
    // Predicated region
    $region46: #{tpu_custom_call.1} parent=1 // pred_check
      %p312 = pneg %p82
    $region47: #{tpu_custom_call.1} parent=1 // pred_check_branch
      %314 = sbr.rel (%p312) target = $region49
    $region48: #{tpu_custom_call.1} parent=1 // pred_region
      %v315 = vld [vmem:[#allocation10] sm:$0xff]
      %v316 = vld [vmem:[#allocation10 + $0x8] sm:$0xff]
      %v317 = vld [vmem:[%s4] sm:$0x1]
      %v319 = vlaneseq
      %v320 = vshrl.u32 %v319, 7
      %v321 = vsub.s32 0, %v320
      %v322 = vrot.slane %v317, %v321
      %v324 = vadd.f32 %v315, %v322
      %v325 = vadd.f32 %v316, %v322
      %326 = vst [vmem:[#allocation10] sm:$0xff] %v324
      %327 = vst [vmem:[#allocation10 + $0x8] sm:$0xff] %v325
      %v328 = vld [vmem:[#allocation11] sm:$0xff]
      %v329 = vld [vmem:[#allocation11 + $0x8] sm:$0xff]
      %v330 = vld [vmem:[%s5] sm:$0x1]
      %v332 = vlaneseq
      %v333 = vshrl.u32 %v332, 7
      %v334 = vsub.s32 0, %v333
      %v335 = vrot.slane %v330, %v334
      %v337 = vadd.f32 %v328, %v335
      %v338 = vadd.f32 %v329, %v335
      %339 = vst [vmem:[#allocation11] sm:$0xff] %v337
      %340 = vst [vmem:[#allocation11 + $0x8] sm:$0xff] %v338
    $region49: #{tpu_custom_call.1} parent=1 // pred_fallthru
      _
    // Predicated region
    $region50: #{tpu_custom_call.1} parent=1 // pred_check
      _
    $region51: #{tpu_custom_call.1} parent=1 // pred_check_branch
      %342 = sbr.rel (0) target = $region53
    $region52: #{tpu_custom_call.1} parent=1 // pred_region
      %s344 = ssub.s32 256, 256
      %345 = vsyncadd [#allocation4], %s344
      %s346 = sshll.u32 [#allocation10], 4
      %s347 = int_to_ptr.vmem [resolvable:$true] %s346
      %352 = dma.vmem_to_hbm [thread:$0]  %s347, 256, %s6, [#allocation4], 128, 128, 8
    $region53: #{tpu_custom_call.1} parent=1 // pred_fallthru
      _
    // Predicated region
    $region54: #{tpu_custom_call.1} parent=1 // pred_check
      _
    $region55: #{tpu_custom_call.1} parent=1 // pred_check_branch
      %354 = sbr.rel (0) target = $region57
    $region56: #{tpu_custom_call.1} parent=1 // pred_region
      %s356 = ssub.s32 256, 256
      %357 = vsyncadd [#allocation12], %s356
      %s358 = sshll.u32 [#allocation11], 4
      %s359 = int_to_ptr.vmem [resolvable:$true] %s358
      %364 = dma.vmem_to_hbm [thread:$0]  %s359, 256, %s7, [#allocation12], 128, 128, 8
    $region57: #{tpu_custom_call.1} parent=1 // pred_fallthru
      _
    // Predicated region
    $region58: #{tpu_custom_call.1} parent=1 // pred_check
      _
    $region59: #{tpu_custom_call.1} parent=1 // pred_check_branch
      %366 = sbr.rel (0) target = $region61
    $region60: #{tpu_custom_call.1} parent=1 // pred_region
      %367 = dma.done [#allocation4], 256
    $region61: #{tpu_custom_call.1} parent=1 // pred_fallthru
      _
    // Predicated region
    $region62: #{tpu_custom_call.1} parent=1 // pred_check
      _
    $region63: #{tpu_custom_call.1} parent=1 // pred_check_branch
      %369 = sbr.rel (0) target = $region65
    $region64: #{tpu_custom_call.1} parent=1 // pred_region
      %370 = dma.done [#allocation12], 256
    $region65: #{tpu_custom_call.1} parent=1 // pred_fallthru
      _
    %371 = vsyncpa [#allocation3], 1
    %372 = vsyncpa [#allocation6], 1
    %373 = vsyncpa [#allocation9], 1
    %374 = vsyncpa [#allocation4], 1
    %375 = vsyncpa [#allocation12], 1

</llo_original>
